<compile_context>
chip_gen: v7x
topology: tpu7x:2x2x1
jax: 0.10.0
libtpu: 0.0.40
codegen_flags: <defaults>
</compile_context>

<pallas_src>
import jax
import jax.numpy as jnp
from jax.experimental import pallas as pl
from jax.experimental.pallas import tpu as pltpu

NEG_SLOPE = 0.01  # nn.LeakyReLU default


def _leaky_relu(x):
    return jnp.where(x > 0, x, NEG_SLOPE * x)


def _round_up(n, m):
    return ((n + m - 1) // m) * m


def mlp_kernel(x_ref, w1_ref, b1_ref, w2_ref, b2_ref, w3_ref, b3_ref, o_ref):
    # Whole 3-layer MLP for one batch tile, entirely in VMEM, f32 accumulation.
    x = x_ref[...]
    h1 = jnp.dot(x, w1_ref[...], preferred_element_type=jnp.float32) + b1_ref[...]
    h1 = _leaky_relu(h1)
    h2 = jnp.dot(h1, w2_ref[...], preferred_element_type=jnp.float32) + b2_ref[...]
    h2 = _leaky_relu(h2)
    out = jnp.dot(h2, w3_ref[...], preferred_element_type=jnp.float32) + b3_ref[...]
    o_ref[...] = out.astype(o_ref.dtype)


def _pad_params(params):
    """Zero-pad hidden dims to lane-aligned widths: h1 100->128, h2 50->64."""
    w1, b1, w2, b2, w3, b3 = params
    in_dim, h1 = w1.shape
    h2 = w2.shape[1]
    out_dim = w3.shape[1]
    h1p = _round_up(h1, 128)
    h2p = _round_up(h2, 64)

    w1p = jnp.zeros((in_dim, h1p), w1.dtype).at[:, :h1].set(w1)
    b1p = jnp.zeros((1, h1p), b1.dtype).at[:, :h1].set(b1)
    w2p = jnp.zeros((h1p, h2p), w2.dtype).at[:h1, :h2].set(w2)
    b2p = jnp.zeros((1, h2p), b2.dtype).at[:, :h2].set(b2)
    w3p = jnp.zeros((h2p, out_dim), w3.dtype).at[:h2, :].set(w3)
    return (w1p, b1p, w2p, b2p, w3p, b3)


def _choose_batch_tile(B, batch_tile):
    """Large sublane-aligned tile; >=2 grid steps when the batch is big enough
    so v7x's two TensorCores both get work (harmless on single-TC chips)."""
    tb = min(batch_tile, _round_up(B, 8))
    tb = _round_up(tb, 8)
    if B > 256:
        tb = min(tb, _round_up(pl.cdiv(B, 2), 8))
    return max(tb, 8)


def regression_mean_estimator_forward(x, params, *, batch_tile=1024):
    """x: [B, input_size] float32 -> matches PyTorch forward semantics."""
    w1, b1, w2, b2, w3, b3 = _pad_params(params)
    B, in_dim = x.shape
    h1_dim = w1.shape[1]   # padded 128
    h2_dim = w2.shape[1]   # padded 64
    out_dim = w3.shape[1]  # output_size (unpadded)

    tb = _choose_batch_tile(B, batch_tile)
    Bp = _round_up(B, tb)
    if Bp != B:
        x = jnp.zeros((Bp, in_dim), x.dtype).at[:B, :].set(x)
    grid = (Bp // tb,)

    res = pl.pallas_call(
        mlp_kernel,
        out_shape=jax.ShapeDtypeStruct((Bp, out_dim), x.dtype),
        grid_spec=pltpu.PrefetchScalarGridSpec(
            num_scalar_prefetch=0,
            grid=grid,
            in_specs=[
                pl.BlockSpec((tb, in_dim), lambda i: (i, 0)),        # x tile
                # Constant-index specs: block index never changes, so the
                # weights/biases are DMA'd into VMEM once, not per grid step.
                pl.BlockSpec((in_dim, h1_dim), lambda i: (0, 0)),    # w1
                pl.BlockSpec((1, h1_dim), lambda i: (0, 0)),         # b1
                pl.BlockSpec((h1_dim, h2_dim), lambda i: (0, 0)),    # w2
                pl.BlockSpec((1, h2_dim), lambda i: (0, 0)),         # b2
                pl.BlockSpec((h2_dim, out_dim), lambda i: (0, 0)),   # w3
                pl.BlockSpec((1, out_dim), lambda i: (0, 0)),        # b3
            ],
            out_specs=pl.BlockSpec((tb, out_dim), lambda i: (i, 0)),
        ),
        compiler_params=pltpu.CompilerParams(
            dimension_semantics=("parallel",)),
    )(x, w1, b1, w2, b2, w3, b3)

    res = res[:B]
    # PyTorch: if res.shape[-1] != 1: res = res.unsqueeze(-1)
    if res.shape[-1] != 1:
        res = res[..., None]
    return res


def init_params(key, input_size, output_size, dtype=jnp.float32):
    """Deterministic init mimicking nn.Linear's uniform(-1/sqrt(fan_in), +)."""
    dims = [(input_size, 100), (100, 50), (50, output_size)]
    params = []
    for (fan_in, fan_out) in dims:
        key, kw, kb = jax.random.split(key, 3)
        bound = 1.0 / jnp.sqrt(fan_in)
        w = jax.random.uniform(kw, (fan_in, fan_out), dtype, -bound, bound)
        b = jax.random.uniform(kb, (1, fan_out), dtype, -bound, bound)
        params += [w, b]
    return tuple(params)


def reference_forward(x, params):
    w1, b1, w2, b2, w3, b3 = params
    h1 = jax.nn.leaky_relu(x @ w1 + b1, NEG_SLOPE)
    h2 = jax.nn.leaky_relu(h1 @ w2 + b2, NEG_SLOPE)
    res = h2 @ w3 + b3
    if res.shape[-1] != 1:
        res = res[..., None]
    return res


if __name__ == "__main__":
    key = jax.random.PRNGKey(0)

    # Case 1: small batch, output_size != 1 (exercises unsqueeze(-1) branch).
    input_size = 32
    output_size = 4
    batch = 8
    kx, kp, key = jax.random.split(key, 3)
    x = jax.random.normal(kx, (batch, input_size), jnp.float32)
    params = init_params(kp, input_size, output_size)
    out = jax.block_until_ready(regression_mean_estimator_forward(x, params))
    ref = reference_forward(x, params)
    assert out.shape == (batch, output_size, 1), out.shape
    assert jnp.allclose(out, ref, atol=1e-5, rtol=1e-5), "mismatch vs reference (case 1)"

    # Case 2: non-divisible batch, output_size == 1 (exercises cdiv+pad path,
    # multi-step grid, and the no-unsqueeze branch).
    input_size2 = 32
    output_size2 = 1
    batch2 = 300
    kx2, kp2, key = jax.random.split(key, 3)
    x2 = jax.random.normal(kx2, (batch2, input_size2), jnp.float32)
    params2 = init_params(kp2, input_size2, output_size2)
    out2 = jax.block_until_ready(regression_mean_estimator_forward(x2, params2))
    ref2 = reference_forward(x2, params2)
    assert out2.shape == (batch2, output_size2), out2.shape
    assert jnp.allclose(out2, ref2, atol=1e-5, rtol=1e-5), "mismatch vs reference (case 2)"

    print("KERNEL_OK")
</pallas_src>

<mosaic_0001>
module attributes {stable_mosaic.version = 11 : i64} {
  func.func @mlp_kernel(%arg0: i32, %arg1: memref<8x32xf32, #tpu.memory_space<vmem>>, %arg2: memref<32x128xf32, #tpu.memory_space<vmem>>, %arg3: memref<1x128xf32, #tpu.memory_space<vmem>>, %arg4: memref<128x64xf32, #tpu.memory_space<vmem>>, %arg5: memref<1x64xf32, #tpu.memory_space<vmem>>, %arg6: memref<64x4xf32, #tpu.memory_space<vmem>>, %arg7: memref<1x4xf32, #tpu.memory_space<vmem>>, %arg8: memref<8x4xf32, #tpu.memory_space<vmem>>) attributes {dimension_semantics = [#tpu.dimension_semantics<parallel>], iteration_bounds = array<i64: 1>, scalar_prefetch = 0 : i64, scratch_operands = 0 : i64, tpu.core_type = #tpu.core_type<tc>, window_params = [{transform_indices = @transform_0, window_bounds = array<i64: 8, 32>}, {pipeline_mode = #tpu.pipeline_mode<synchronous>, transform_indices = @transform_1, window_bounds = array<i64: 32, 128>}, {pipeline_mode = #tpu.pipeline_mode<synchronous>, transform_indices = @transform_2, window_bounds = array<i64: 1, 128>}, {pipeline_mode = #tpu.pipeline_mode<synchronous>, transform_indices = @transform_3, window_bounds = array<i64: 128, 64>}, {pipeline_mode = #tpu.pipeline_mode<synchronous>, transform_indices = @transform_4, window_bounds = array<i64: 1, 64>}, {pipeline_mode = #tpu.pipeline_mode<synchronous>, transform_indices = @transform_5, window_bounds = array<i64: 64, 4>}, {pipeline_mode = #tpu.pipeline_mode<synchronous>, transform_indices = @transform_6, window_bounds = array<i64: 1, 4>}, {transform_indices = @transform_7, window_bounds = array<i64: 8, 4>}]} {
    %c0 = arith.constant 0 : index
    %c0_0 = arith.constant 0 : index
    %0 = vector.load %arg1[%c0, %c0_0] : memref<8x32xf32, #tpu.memory_space<vmem>>, vector<8x32xf32>
    %c0_1 = arith.constant 0 : index
    %c0_2 = arith.constant 0 : index
    %1 = vector.load %arg2[%c0_1, %c0_2] : memref<32x128xf32, #tpu.memory_space<vmem>>, vector<32x128xf32>
    %cst = arith.constant dense<0.000000e+00> : vector<8x128xf32>
    %2 = tpu.matmul %0, %1, %cst {dimension_numbers = #tpu.dot_dimension_numbers<[1], [0], [0], [1], [0, 0, 1, 1], [], []>} : vector<8x32xf32>, vector<32x128xf32>, vector<8x128xf32> -> vector<8x128xf32>
    %c0_3 = arith.constant 0 : index
    %c0_4 = arith.constant 0 : index
    %3 = vector.load %arg3[%c0_3, %c0_4] : memref<1x128xf32, #tpu.memory_space<vmem>>, vector<1x128xf32>
    %4 = vector.broadcast %3 : vector<1x128xf32> to vector<8x128xf32>
    %5 = arith.addf %2, %4 : vector<8x128xf32>
    %cst_5 = arith.constant 0.000000e+00 : f32
    %6 = vector.broadcast %cst_5 : f32 to vector<8x128xf32>
    %7 = arith.cmpf ogt, %5, %6 : vector<8x128xf32>
    %cst_6 = arith.constant 0.00999999977 : f32
    %8 = vector.broadcast %cst_6 : f32 to vector<8x128xf32>
    %9 = arith.mulf %8, %5 : vector<8x128xf32>
    %10 = arith.select %7, %5, %9 : vector<8x128xi1>, vector<8x128xf32>
    %c0_7 = arith.constant 0 : index
    %c0_8 = arith.constant 0 : index
    %11 = vector.load %arg4[%c0_7, %c0_8] : memref<128x64xf32, #tpu.memory_space<vmem>>, vector<128x64xf32>
    %cst_9 = arith.constant dense<0.000000e+00> : vector<8x64xf32>
    %12 = tpu.matmul %10, %11, %cst_9 {dimension_numbers = #tpu.dot_dimension_numbers<[1], [0], [0], [1], [0, 0, 1, 1], [], []>} : vector<8x128xf32>, vector<128x64xf32>, vector<8x64xf32> -> vector<8x64xf32>
    %c0_10 = arith.constant 0 : index
    %c0_11 = arith.constant 0 : index
    %13 = vector.load %arg5[%c0_10, %c0_11] : memref<1x64xf32, #tpu.memory_space<vmem>>, vector<1x64xf32>
    %14 = vector.broadcast %13 : vector<1x64xf32> to vector<8x64xf32>
    %15 = arith.addf %12, %14 : vector<8x64xf32>
    %cst_12 = arith.constant 0.000000e+00 : f32
    %16 = vector.broadcast %cst_12 : f32 to vector<8x64xf32>
    %17 = arith.cmpf ogt, %15, %16 : vector<8x64xf32>
    %cst_13 = arith.constant 0.00999999977 : f32
    %18 = vector.broadcast %cst_13 : f32 to vector<8x64xf32>
    %19 = arith.mulf %18, %15 : vector<8x64xf32>
    %20 = arith.select %17, %15, %19 : vector<8x64xi1>, vector<8x64xf32>
    %c0_14 = arith.constant 0 : index
    %c0_15 = arith.constant 0 : index
    %21 = vector.load %arg6[%c0_14, %c0_15] : memref<64x4xf32, #tpu.memory_space<vmem>>, vector<64x4xf32>
    %cst_16 = arith.constant dense<0.000000e+00> : vector<8x4xf32>
    %22 = tpu.matmul %20, %21, %cst_16 {dimension_numbers = #tpu.dot_dimension_numbers<[1], [0], [0], [1], [0, 0, 1, 1], [], []>} : vector<8x64xf32>, vector<64x4xf32>, vector<8x4xf32> -> vector<8x4xf32>
    %c0_17 = arith.constant 0 : index
    %c0_18 = arith.constant 0 : index
    %23 = vector.load %arg7[%c0_17, %c0_18] : memref<1x4xf32, #tpu.memory_space<vmem>>, vector<1x4xf32>
    %24 = vector.broadcast %23 : vector<1x4xf32> to vector<8x4xf32>
    %25 = arith.addf %22, %24 : vector<8x4xf32>
    %c0_19 = arith.constant 0 : index
    %c0_20 = arith.constant 0 : index
    %26 = vector.load %arg8[%c0_19, %c0_20] : memref<8x4xf32, #tpu.memory_space<vmem>>, vector<8x4xf32>
    tpu.vector_store %arg8[%c0_19, %c0_20], %25 {strides = array<i32>} : memref<8x4xf32, #tpu.memory_space<vmem>>, vector<8x4xf32>,
    return
  }
  func.func @transform_0(%arg0: i32) -> (i32, i32) {
    %c0_i32 = arith.constant 0 : i32
    %c0_i32_0 = arith.constant 0 : i32
    return %arg0, %c0_i32 : i32, i32
  }
  func.func @transform_1(%arg0: i32) -> (i32, i32) {
    %c0_i32 = arith.constant 0 : i32
    %c0_i32_0 = arith.constant 0 : i32
    %c0_i32_1 = arith.constant 0 : i32
    return %c0_i32, %c0_i32_0 : i32, i32
  }
  func.func @transform_2(%arg0: i32) -> (i32, i32) {
    %c0_i32 = arith.constant 0 : i32
    %c0_i32_0 = arith.constant 0 : i32
    %c0_i32_1 = arith.constant 0 : i32
    return %c0_i32, %c0_i32_0 : i32, i32
  }
  func.func @transform_3(%arg0: i32) -> (i32, i32) {
    %c0_i32 = arith.constant 0 : i32
    %c0_i32_0 = arith.constant 0 : i32
    %c0_i32_1 = arith.constant 0 : i32
    return %c0_i32, %c0_i32_0 : i32, i32
  }
  func.func @transform_4(%arg0: i32) -> (i32, i32) {
    %c0_i32 = arith.constant 0 : i32
    %c0_i32_0 = arith.constant 0 : i32
    %c0_i32_1 = arith.constant 0 : i32
    return %c0_i32, %c0_i32_0 : i32, i32
  }
  func.func @transform_5(%arg0: i32) -> (i32, i32) {
    %c0_i32 = arith.constant 0 : i32
    %c0_i32_0 = arith.constant 0 : i32
    %c0_i32_1 = arith.constant 0 : i32
    return %c0_i32, %c0_i32_0 : i32, i32
  }
  func.func @transform_6(%arg0: i32) -> (i32, i32) {
    %c0_i32 = arith.constant 0 : i32
    %c0_i32_0 = arith.constant 0 : i32
    %c0_i32_1 = arith.constant 0 : i32
    return %c0_i32, %c0_i32_0 : i32, i32
  }
  func.func @transform_7(%arg0: i32) -> (i32, i32) {
    %c0_i32 = arith.constant 0 : i32
    %c0_i32_0 = arith.constant 0 : i32
    return %arg0, %c0_i32 : i32, i32
  }
}

</mosaic_0001>

<llo_original>
// kernel: tpu_custom_call.1
$region0: #{tpu_custom_call.1}
  #allocation0 [shape = 'u32[]', space=smem, size = 0x4, offset = 0x4, fixed_abs, tag = 'smem constant byte address 0x4 - core index']
  #allocation1 [shape = 'u32[144,128]{1,0:T(1,128)}', space=vmem, size = 0x12000, scoped, tag = 'internal scratch']
  %s0 = inlined_call_operand.vmem [shape: f32[8,32], index: 0, kind: input, shape index: {}]
  %s1 = inlined_call_operand.vmem [shape: f32[32,128], index: 1, kind: input, shape index: {}]
  %s2 = inlined_call_operand.vmem [shape: f32[1,128], index: 2, kind: input, shape index: {}]
  %s3 = inlined_call_operand.vmem [shape: f32[128,64], index: 3, kind: input, shape index: {}]
  %s4 = inlined_call_operand.vmem [shape: f32[1,64], index: 4, kind: input, shape index: {}]
  %s5 = inlined_call_operand.vmem [shape: f32[64,4], index: 5, kind: input, shape index: {}]
  %s6 = inlined_call_operand.vmem [shape: f32[1,4], index: 6, kind: input, shape index: {}]
  %s7 = inlined_call_operand.vmem [shape: f32[8,4], index: 7, kind: output, shape index: {}]
  %s8 = sld [smem:[#allocation0]]
  $region38: #{tpu_custom_call.1} parent=0
    _
  %s10 = ssub.s32 1, %s8
  %s11 = scalar_select 0, %s10, %s8
  // Predicated region
  $region2: #{tpu_custom_call.1} parent=0 // pred_check
    _
  $region3: #{tpu_custom_call.1} parent=0 // pred_check_branch
    %13 = sbr.rel (0) target = $region5
  $region4: #{tpu_custom_call.1} parent=0 // pred_region
    _
  $region5: #{tpu_custom_call.1} parent=0 // pred_fallthru
    _
  // Predicated region
  $region6: #{tpu_custom_call.1} parent=0 // pred_check
    _
  $region7: #{tpu_custom_call.1} parent=0 // pred_check_branch
    %15 = sbr.rel (0) target = $region9
  $region8: #{tpu_custom_call.1} parent=0 // pred_region
    _
  $region9: #{tpu_custom_call.1} parent=0 // pred_fallthru
    _
  // Predicated region
  $region10: #{tpu_custom_call.1} parent=0 // pred_check
    _
  $region11: #{tpu_custom_call.1} parent=0 // pred_check_branch
    %17 = sbr.rel (0) target = $region13
  $region12: #{tpu_custom_call.1} parent=0 // pred_region
    _
  $region13: #{tpu_custom_call.1} parent=0 // pred_fallthru
    _
  // Predicated region
  $region14: #{tpu_custom_call.1} parent=0 // pred_check
    _
  $region15: #{tpu_custom_call.1} parent=0 // pred_check_branch
    %19 = sbr.rel (0) target = $region17
  $region16: #{tpu_custom_call.1} parent=0 // pred_region
    _
  $region17: #{tpu_custom_call.1} parent=0 // pred_fallthru
    _
  // Predicated region
  $region18: #{tpu_custom_call.1} parent=0 // pred_check
    _
  $region19: #{tpu_custom_call.1} parent=0 // pred_check_branch
    %21 = sbr.rel (0) target = $region21
  $region20: #{tpu_custom_call.1} parent=0 // pred_region
    _
  $region21: #{tpu_custom_call.1} parent=0 // pred_fallthru
    _
  // Predicated region
  $region22: #{tpu_custom_call.1} parent=0 // pred_check
    _
  $region23: #{tpu_custom_call.1} parent=0 // pred_check_branch
    %23 = sbr.rel (0) target = $region25
  $region24: #{tpu_custom_call.1} parent=0 // pred_region
    _
  $region25: #{tpu_custom_call.1} parent=0 // pred_fallthru
    _
  // Predicated region
  $region26: #{tpu_custom_call.1} parent=0 // pred_check
    _
  $region27: #{tpu_custom_call.1} parent=0 // pred_check_branch
    %25 = sbr.rel (0) target = $region29
  $region28: #{tpu_custom_call.1} parent=0 // pred_region
    _
  $region29: #{tpu_custom_call.1} parent=0 // pred_fallthru
    _
  %v26 = vld [vmem:[%s0] sm:$0xff]
  %v27 = vld [vmem:[%s1] sm:$0xff]
  %v28 = vld [vmem:[%s1 + $0x8] sm:$0xff]
  %v29 = vld [vmem:[%s1 + $0x10] sm:$0xff]
  %v30 = vld [vmem:[%s1 + $0x18] sm:$0xff]
  %v31 = vld [vmem:[%s2] sm:$0x1]
  %v33 = vlaneseq
  %v34 = vshrl.u32 %v33, 7
  %v35 = vsub.s32 0, %v34
  %v36 = vrot.slane %v31, %v35
  %vm38 = vcmask 261120
  %v40 = vsel %vm38, %v26, 0
  %42 = vmatprep.subr.mxu0 0.0
  %43 = vmatpush1.msra.mxu0 %v27
  %44 = vmatprep.subr.mxu0 0.0
  %45 = vmatpush1.msra.mxu0 %v28
  %46 = vmatprep.subr.mxu0 0.0
  %47 = vmatpush1.msra.mxu0 %v29
  %48 = vmatprep.subr.mxu0 0.0
  %49 = vmatpush1.msra.mxu0 %v30
  %50 = vmatprep.subr.mxu0 0.0
  %51 = vmatpush1.msra.mxu0 0.0
  %52 = vmatprep.subr.mxu0 0.0
  %53 = vmatpush1.msra.mxu0 0.0
  %54 = vmatprep.subr.mxu0 0.0
  %55 = vmatpush1.msra.mxu0 0.0
  %56 = vmatprep.subr.mxu0 0.0
  %57 = vmatpush1.msra.mxu0 0.0
  %58 = vmatprep.subr.mxu0 0.0
  %59 = vmatpush1.msra.mxu0 0.0
  %60 = vmatprep.subr.mxu0 0.0
  %61 = vmatpush1.msra.mxu0 0.0
  %62 = vmatprep.subr.mxu0 0.0
  %63 = vmatpush1.msra.mxu0 0.0
  %64 = vmatprep.subr.mxu0 0.0
  %65 = vmatpush1.msra.mxu0 0.0
  %66 = vmatprep.subr.mxu0 0.0
  %67 = vmatpush1.msra.mxu0 0.0
  %68 = vmatprep.subr.mxu0 0.0
  %69 = vmatpush1.msra.mxu0 0.0
  %70 = vmatprep.subr.mxu0 0.0
  %71 = vmatpush1.msra.mxu0 0.0
  %72 = vmatprep.subr.mxu0 0.0
  %73 = vmatpush1.msra.mxu0 0.0
  %74 = vmatprep.subr.mxu0 0.0
  %75 = vmatpush1.msra.mxu0 0.0
  %76 = vmatprep.subr.mxu0 0.0
  %77 = vmatpush1.msra.mxu0 0.0
  %78 = vmatprep.subr.mxu0 0.0
  %79 = vmatpush1.msra.mxu0 0.0
  %80 = vmatprep.subr.mxu0 0.0
  %81 = vmatpush1.msra.mxu0 0.0
  %82 = vmatprep.subr.mxu0 0.0
  %83 = vmatpush1.msra.mxu0 0.0
  %84 = vmatprep.subr.mxu0 0.0
  %85 = vmatpush1.msra.mxu0 0.0
  %86 = vmatprep.subr.mxu0 0.0
  %87 = vmatpush1.msra.mxu0 0.0
  %88 = vmatprep.subr.mxu0 0.0
  %89 = vmatpush1.msra.mxu0 0.0
  %90 = vmatprep.subr.mxu0 0.0
  %91 = vmatpush1.msra.mxu0 0.0
  %92 = vmatprep.subr.mxu0 0.0
  %93 = vmatpush1.msra.mxu0 0.0
  %94 = vmatprep.subr.mxu0 0.0
  %95 = vmatpush1.msra.mxu0 0.0
  %96 = vmatprep.subr.mxu0 0.0
  %97 = vmatpush1.msra.mxu0 0.0
  %98 = vmatprep.subr.mxu0 0.0
  %99 = vmatpush1.msra.mxu0 0.0
  %100 = vmatprep.subr.mxu0 0.0
  %101 = vmatpush1.msra.mxu0 0.0
  %102 = vmatprep.subr.mxu0 0.0
  %103 = vmatpush1.msra.mxu0 0.0
  %104 = vmatprep.subr.mxu0 0.0
  %105 = vmatpush1.msra.mxu0 0.0
  %106 = vmatprep.mubr.f32.mxu0 0.0
  %107 = vmatmul.mubr.f32.gmra.mrb[0].mxu0 %v40
  %v108 = vpop.f32.mrb[0].mxu0
  %v109 = vadd.f32 %v36, %v108
  %v110 = vpop.f32.mrb[0].mxu0
  %111 = vdwg.mxu0
  %vm112 = vcmp.gt.f32.partialorder %v109, 0.0
  %v113 = vmul.f32 %v109, 0.01
  %v114 = vsel %vm112, %v109, %v113
  %v115 = vld [vmem:[%s3] sm:$0xff]
  %v116 = vld [vmem:[%s3 + $0x8] sm:$0xff]
  %v117 = vld [vmem:[%s3 + $0x10] sm:$0xff]
  %v118 = vld [vmem:[%s3 + $0x18] sm:$0xff]
  %v119 = vld [vmem:[%s3 + $0x20] sm:$0xff]
  %v120 = vld [vmem:[%s3 + $0x28] sm:$0xff]
  %v121 = vld [vmem:[%s3 + $0x30] sm:$0xff]
  %v122 = vld [vmem:[%s3 + $0x38] sm:$0xff]
  %v123 = vld [vmem:[%s3 + $0x40] sm:$0xff]
  %v124 = vld [vmem:[%s3 + $0x48] sm:$0xff]
  %v125 = vld [vmem:[%s3 + $0x50] sm:$0xff]
  %v126 = vld [vmem:[%s3 + $0x58] sm:$0xff]
  %v127 = vld [vmem:[%s3 + $0x60] sm:$0xff]
  %v128 = vld [vmem:[%s3 + $0x68] sm:$0xff]
  %v129 = vld [vmem:[%s3 + $0x70] sm:$0xff]
  %v130 = vld [vmem:[%s3 + $0x78] sm:$0xff]
  %v131 = vld [vmem:[%s4] sm:$0x1]
  %v133 = vlaneseq
  %v134 = vshrl.u32 %v133, 7
  %v135 = vsub.s32 0, %v134
  %v136 = vrot.slane %v131, %v135
  %138 = vmatprep.subr.mxu0 0.0
  %139 = vmatpush1.msra.mxu0 %v115
  %140 = vmatprep.subr.mxu0 0.0
  %141 = vmatpush1.msra.mxu0 %v116
  %142 = vmatprep.subr.mxu0 0.0
  %143 = vmatpush1.msra.mxu0 %v117
  %144 = vmatprep.subr.mxu0 0.0
  %145 = vmatpush1.msra.mxu0 %v118
  %146 = vmatprep.subr.mxu0 0.0
  %147 = vmatpush1.msra.mxu0 %v119
  %148 = vmatprep.subr.mxu0 0.0
  %149 = vmatpush1.msra.mxu0 %v120
  %150 = vmatprep.subr.mxu0 0.0
  %151 = vmatpush1.msra.mxu0 %v121
  %152 = vmatprep.subr.mxu0 0.0
  %153 = vmatpush1.msra.mxu0 %v122
  %154 = vmatprep.subr.mxu0 0.0
  %155 = vmatpush1.msra.mxu0 %v123
  %156 = vmatprep.subr.mxu0 0.0
  %157 = vmatpush1.msra.mxu0 %v124
  %158 = vmatprep.subr.mxu0 0.0
  %159 = vmatpush1.msra.mxu0 %v125
  %160 = vmatprep.subr.mxu0 0.0
  %161 = vmatpush1.msra.mxu0 %v126
  %162 = vmatprep.subr.mxu0 0.0
  %163 = vmatpush1.msra.mxu0 %v127
  %164 = vmatprep.subr.mxu0 0.0
  %165 = vmatpush1.msra.mxu0 %v128
  %166 = vmatprep.subr.mxu0 0.0
  %167 = vmatpush1.msra.mxu0 %v129
  %168 = vmatprep.subr.mxu0 0.0
  %169 = vmatpush1.msra.mxu0 %v130
  %170 = vmatprep.subr.mxu0 0.0
  %171 = vmatpush1.msra.mxu0 0.0
  %172 = vmatprep.subr.mxu0 0.0
  %173 = vmatpush1.msra.mxu0 0.0
  %174 = vmatprep.subr.mxu0 0.0
  %175 = vmatpush1.msra.mxu0 0.0
  %176 = vmatprep.subr.mxu0 0.0
  %177 = vmatpush1.msra.mxu0 0.0
  %178 = vmatprep.subr.mxu0 0.0
  %179 = vmatpush1.msra.mxu0 0.0
  %180 = vmatprep.subr.mxu0 0.0
  %181 = vmatpush1.msra.mxu0 0.0
  %182 = vmatprep.subr.mxu0 0.0
  %183 = vmatpush1.msra.mxu0 0.0
  %184 = vmatprep.subr.mxu0 0.0
  %185 = vmatpush1.msra.mxu0 0.0
  %186 = vmatprep.subr.mxu0 0.0
  %187 = vmatpush1.msra.mxu0 0.0
  %188 = vmatprep.subr.mxu0 0.0
  %189 = vmatpush1.msra.mxu0 0.0
  %190 = vmatprep.subr.mxu0 0.0
  %191 = vmatpush1.msra.mxu0 0.0
  %192 = vmatprep.subr.mxu0 0.0
  %193 = vmatpush1.msra.mxu0 0.0
  %194 = vmatprep.subr.mxu0 0.0
  %195 = vmatpush1.msra.mxu0 0.0
  %196 = vmatprep.subr.mxu0 0.0
  %197 = vmatpush1.msra.mxu0 0.0
  %198 = vmatprep.subr.mxu0 0.0
  %199 = vmatpush1.msra.mxu0 0.0
  %200 = vmatprep.subr.mxu0 0.0
  %201 = vmatpush1.msra.mxu0 0.0
  %202 = vmatprep.mubr.f32.mxu0 0.0
  %203 = vmatmul.mubr.f32.gmra.mrb[0].mxu0 %v114
  %v204 = vpop.f32.mrb[0].mxu0
  %v205 = vadd.f32 %v136, %v204
  %v206 = vpop.f32.mrb[0].mxu0
  %207 = vdwg.mxu0
  %vm208 = vcmp.gt.f32.partialorder %v205, 0.0
  %v209 = vmul.f32 %v205, 0.01
  %v210 = vsel %vm208, %v205, %v209
  %v211 = vld [vmem:[%s5] sm:$0xff]
  %v212 = vld [vmem:[%s5 + $0x8] sm:$0xff]
  %v213 = vld [vmem:[%s5 + $0x10] sm:$0xff]
  %v214 = vld [vmem:[%s5 + $0x18] sm:$0xff]
  %v215 = vld [vmem:[%s5 + $0x20] sm:$0xff]
  %v216 = vld [vmem:[%s5 + $0x28] sm:$0xff]
  %v217 = vld [vmem:[%s5 + $0x30] sm:$0xff]
  %v218 = vld [vmem:[%s5 + $0x38] sm:$0xff]
  %v219 = vld [vmem:[%s6] sm:$0x1]
  %v221 = vlaneseq
  %v222 = vshrl.u32 %v221, 7
  %v223 = vsub.s32 0, %v222
  %v224 = vrot.slane %v219, %v223
  %vm226 = vcmask 523264
  %v228 = vsel %vm226, %v210, 0
  %230 = vmatprep.subr.mxu0 0.0
  %231 = vmatpush1.msra.mxu0 %v211
  %232 = vmatprep.subr.mxu0 0.0
  %233 = vmatpush1.msra.mxu0 %v212
  %234 = vmatprep.subr.mxu0 0.0
  %235 = vmatpush1.msra.mxu0 %v213
  %236 = vmatprep.subr.mxu0 0.0
  %237 = vmatpush1.msra.mxu0 %v214
  %238 = vmatprep.subr.mxu0 0.0
  %239 = vmatpush1.msra.mxu0 %v215
  %240 = vmatprep.subr.mxu0 0.0
  %241 = vmatpush1.msra.mxu0 %v216
  %242 = vmatprep.subr.mxu0 0.0
  %243 = vmatpush1.msra.mxu0 %v217
  %244 = vmatprep.subr.mxu0 0.0
  %245 = vmatpush1.msra.mxu0 %v218
  %246 = vmatprep.subr.mxu0 0.0
  %247 = vmatpush1.msra.mxu0 0.0
  %248 = vmatprep.subr.mxu0 0.0
  %249 = vmatpush1.msra.mxu0 0.0
  %250 = vmatprep.subr.mxu0 0.0
  %251 = vmatpush1.msra.mxu0 0.0
  %252 = vmatprep.subr.mxu0 0.0
  %253 = vmatpush1.msra.mxu0 0.0
  %254 = vmatprep.subr.mxu0 0.0
  %255 = vmatpush1.msra.mxu0 0.0
  %256 = vmatprep.subr.mxu0 0.0
  %257 = vmatpush1.msra.mxu0 0.0
  %258 = vmatprep.subr.mxu0 0.0
  %259 = vmatpush1.msra.mxu0 0.0
  %260 = vmatprep.subr.mxu0 0.0
  %261 = vmatpush1.msra.mxu0 0.0
  %262 = vmatprep.subr.mxu0 0.0
  %263 = vmatpush1.msra.mxu0 0.0
  %264 = vmatprep.subr.mxu0 0.0
  %265 = vmatpush1.msra.mxu0 0.0
  %266 = vmatprep.subr.mxu0 0.0
  %267 = vmatpush1.msra.mxu0 0.0
  %268 = vmatprep.subr.mxu0 0.0
  %269 = vmatpush1.msra.mxu0 0.0
  %270 = vmatprep.subr.mxu0 0.0
  %271 = vmatpush1.msra.mxu0 0.0
  %272 = vmatprep.subr.mxu0 0.0
  %273 = vmatpush1.msra.mxu0 0.0
  %274 = vmatprep.subr.mxu0 0.0
  %275 = vmatpush1.msra.mxu0 0.0
  %276 = vmatprep.subr.mxu0 0.0
  %277 = vmatpush1.msra.mxu0 0.0
  %278 = vmatprep.subr.mxu0 0.0
  %279 = vmatpush1.msra.mxu0 0.0
  %280 = vmatprep.subr.mxu0 0.0
  %281 = vmatpush1.msra.mxu0 0.0
  %282 = vmatprep.subr.mxu0 0.0
  %283 = vmatpush1.msra.mxu0 0.0
  %284 = vmatprep.subr.mxu0 0.0
  %285 = vmatpush1.msra.mxu0 0.0
  %286 = vmatprep.subr.mxu0 0.0
  %287 = vmatpush1.msra.mxu0 0.0
  %288 = vmatprep.subr.mxu0 0.0
  %289 = vmatpush1.msra.mxu0 0.0
  %290 = vmatprep.subr.mxu0 0.0
  %291 = vmatpush1.msra.mxu0 0.0
  %292 = vmatprep.subr.mxu0 0.0
  %293 = vmatpush1.msra.mxu0 0.0
  %294 = vmatprep.mubr.f32.mxu0 0.0
  %295 = vmatmul.mubr.f32.gmra.mrb[0].mxu0 %v228
  %v296 = vpop.f32.mrb[0].mxu0
  %v297 = vadd.f32 %v224, %v296
  %v298 = vpop.f32.mrb[0].mxu0
  %299 = vdwg.mxu0
  %vm300 = vcmask 31744
  %301 = vst.msk [vmem:[%s7] sm:$0xff] %vm300, %v297
  // Predicated region
  $region30: #{tpu_custom_call.1} parent=0 // pred_check
    _
  $region31: #{tpu_custom_call.1} parent=0 // pred_check_branch
    %303 = sbr.rel (0) target = $region33
  $region32: #{tpu_custom_call.1} parent=0 // pred_region
    _
  $region33: #{tpu_custom_call.1} parent=0 // pred_fallthru
    _
  // Predicated region
  $region34: #{tpu_custom_call.1} parent=0 // pred_check
    _
  $region35: #{tpu_custom_call.1} parent=0 // pred_check_branch
    %305 = sbr.rel (0) target = $region37
  $region36: #{tpu_custom_call.1} parent=0 // pred_region
    _
  $region37: #{tpu_custom_call.1} parent=0 // pred_fallthru
    _

</llo_original>
